<compile_context>
chip_gen: v5e
topology: v5e:2x2
jax: 0.10.0
libtpu: 0.0.40
codegen_flags: <defaults>
</compile_context>

<pallas_src>
import jax
import jax.numpy as jnp
from jax import lax
from jax.experimental import pallas as pl
from jax.experimental.pallas import tpu as pltpu

EPS = 1e-3  # F.normalize eps


# ---------------------------------------------------------------------------
# Pre-pass: normalize both feature matrices, fold logit_scale, emit diagonal.
# ---------------------------------------------------------------------------
def _prenorm_kernel(scale_ref, c1_ref, c2_ref, c1s_ref, c2n_ref, diag_ref):
    scale = scale_ref[0, 0]
    c1 = c1_ref[...].astype(jnp.float32)
    c2 = c2_ref[...].astype(jnp.float32)
    # F.normalize(dim=-1, eps): x / max(||x||, eps) == x * rsqrt(max(ss, eps^2))
    c1n = c1 * lax.rsqrt(jnp.maximum(jnp.sum(c1 * c1, axis=-1, keepdims=True), EPS * EPS))
    c2n = c2 * lax.rsqrt(jnp.maximum(jnp.sum(c2 * c2, axis=-1, keepdims=True), EPS * EPS))
    c1s = c1n * scale  # fold logit_scale into the row operand (in f32)
    diag_ref[...] = jnp.sum(c1s * c2n, axis=-1, keepdims=True)       # (tpre, 1)
    c1s_ref[...] = c1s.astype(c1s_ref.dtype)
    c2n_ref[...] = c2n.astype(c2n_ref.dtype)


def _prenormalize(scale_arr, c1, c2, tpre, op_dtype):
    n, dp = c1.shape
    return pl.pallas_call(
        _prenorm_kernel,
        out_shape=(
            jax.ShapeDtypeStruct((n, dp), op_dtype),     # scale * normalize(c1)
            jax.ShapeDtypeStruct((n, dp), op_dtype),     # normalize(c2)
            jax.ShapeDtypeStruct((n, 1), jnp.float32),   # diagonal logits
        ),
        grid=(n // tpre,),
        in_specs=[
            pl.BlockSpec(memory_space=pltpu.MemorySpace.SMEM),  # logit_scale (1,1)
            pl.BlockSpec((tpre, dp), lambda i: (i, 0)),
            pl.BlockSpec((tpre, dp), lambda i: (i, 0)),
        ],
        out_specs=(
            pl.BlockSpec((tpre, dp), lambda i: (i, 0)),
            pl.BlockSpec((tpre, dp), lambda i: (i, 0)),
            pl.BlockSpec((tpre, 1), lambda i: (i, 0)),
        ),
        compiler_params=pltpu.CompilerParams(dimension_semantics=("parallel",)),
    )(scale_arr, c1, c2)


# ---------------------------------------------------------------------------
# Fused partials kernel: one (tq, tk) logits tile serves both CE directions.
# ---------------------------------------------------------------------------
def _clip_partials_kernel(a_ref, b_ref, rmax_ref, rsum_ref, cmax_ref, csum_ref):
    # (tq, tk) logits tile = (scale*a_n) @ b_n.T, contracting the last dim of
    # BOTH operands (no explicit transpose); f32 accumulation on the MXU.
    s = lax.dot_general(a_ref[...], b_ref[...], (((1,), (1,)), ((), ())),
                        preferred_element_type=jnp.float32)
    # Row-direction partials (logsumexp over this column tile).
    rm = jnp.max(s, axis=-1, keepdims=True)                       # (tq, 1)
    rmax_ref[0, 0] = rm
    rsum_ref[0, 0] = jnp.sum(jnp.exp(s - rm), axis=-1, keepdims=True)
    # Column-direction partials (logsumexp over this row tile).
    cm = jnp.max(s, axis=0, keepdims=True)                        # (1, tk)
    cmax_ref[0, 0] = cm
    csum_ref[0, 0] = jnp.sum(jnp.exp(s - cm), axis=0, keepdims=True)


def _clip_partials(a, b, tq, tk, vmem_limit):
    n, dp = a.shape
    ni, nj = n // tq, n // tk
    return pl.pallas_call(
        _clip_partials_kernel,
        out_shape=(
            jax.ShapeDtypeStruct((ni, nj, tq, 1), jnp.float32),   # row max
            jax.ShapeDtypeStruct((ni, nj, tq, 1), jnp.float32),   # row sumexp
            jax.ShapeDtypeStruct((ni, nj, 1, tk), jnp.float32),   # col max
            jax.ShapeDtypeStruct((ni, nj, 1, tk), jnp.float32),   # col sumexp
        ),
        grid=(ni, nj),
        in_specs=[
            pl.BlockSpec((tq, dp), lambda i, j: (i, 0)),          # A row tile
            pl.BlockSpec((tk, dp), lambda i, j: (j, 0)),          # B column stream
        ],
        out_specs=(
            pl.BlockSpec((1, 1, tq, 1), lambda i, j: (i, j, 0, 0)),
            pl.BlockSpec((1, 1, tq, 1), lambda i, j: (i, j, 0, 0)),
            pl.BlockSpec((1, 1, 1, tk), lambda i, j: (i, j, 0, 0)),
            pl.BlockSpec((1, 1, 1, tk), lambda i, j: (i, j, 0, 0)),
        ),
        compiler_params=pltpu.CompilerParams(
            dimension_semantics=("parallel", "parallel"),
            vmem_limit_bytes=vmem_limit),
    )(a, b)


def _pick_tile(n, cap):
    for t in (512, 256, 128, 64, 32, 16, 8):
        if t <= cap and n % t == 0:
            return t
    return n  # small / odd batch: single full-size tile
    # TODO(synk): for large prime-ish n, pad the batch with masked rows instead.


def clip_loss(cat1_features, cat2_features, logit_scale=1.0, *,
              tq=None, tk=None, matmul_dtype=None):
    """Pallas TPU implementation of CLIPLoss.forward (returns scalar loss)."""
    assert cat1_features.shape == cat2_features.shape
    assert cat1_features.ndim == 2
    n, d = cat1_features.shape

    # Lane-align the feature dim (zero padding changes neither norms nor dots).
    dp = pl.cdiv(d, 128) * 128
    if dp != d:
        cat1_features = jnp.pad(cat1_features, ((0, 0), (0, dp - d)))
        cat2_features = jnp.pad(cat2_features, ((0, 0), (0, dp - d)))

    op_dtype = jnp.dtype(matmul_dtype) if matmul_dtype is not None else jnp.dtype(cat1_features.dtype)
    op_isz = op_dtype.itemsize

    # Tile choice: maximize tq first (column stream is re-read n/tq times),
    # keep the double-buffered per-step footprint within a v7x-safe budget.
    budget = 24 << 20
    if tk is None:
        tk = _pick_tile(n, 256)
    if tq is None:
        cap = max(8, budget // (2 * dp * op_isz) - tk)
        tq = _pick_tile(n, min(512, cap))
    assert n % tq == 0 and n % tk == 0

    est = 2 * (tq + tk) * dp * op_isz + 2 * 2 * 4 * (tq + tk)   # double-buffered blocks
    vmem_limit = int(min(max(2 * est, 32 << 20), 64 << 20))

    scale_arr = jnp.full((1, 1), logit_scale, dtype=jnp.float32)

    # Pre-normalize once (scale folded, diagonal emitted) — out of the hot loop.
    cap_pre = max(8, (16 << 20) // max(1, 32 * dp))
    tpre = _pick_tile(n, min(256, cap_pre))
    c1s, c2n, diag = _prenormalize(scale_arr, cat1_features, cat2_features, tpre, op_dtype)

    # Single fused pass producing both CE directions' logsumexp partials.
    rmax, rsum, cmax, csum = _clip_partials(c1s, c2n, tq, tk, vmem_limit)

    ni, nj = n // tq, n // tk
    rmax = rmax.reshape(ni, nj, tq)
    rsum = rsum.reshape(ni, nj, tq)
    cmax = cmax.reshape(ni, nj, tk)
    csum = csum.reshape(ni, nj, tk)

    # Exact logsumexp merge of the per-tile partials (tiny arrays, plain XLA).
    m_r = jnp.max(rmax, axis=1)                                           # (ni, tq)
    lse_row = (m_r + jnp.log(jnp.sum(rsum * jnp.exp(rmax - m_r[:, None, :]), axis=1))).reshape(n)
    m_c = jnp.max(cmax, axis=0)                                           # (nj, tk)
    lse_col = (m_c + jnp.log(jnp.sum(csum * jnp.exp(cmax - m_c[None, :, :]), axis=0))).reshape(n)

    diag = diag[:, 0]
    return 0.5 * (jnp.mean(lse_row - diag) + jnp.mean(lse_col - diag))


def clip_loss_ref(cat1, cat2, logit_scale=1.0):
    """Pure-JAX reference for verification."""
    c1 = cat1.astype(jnp.float32)
    c2 = cat2.astype(jnp.float32)
    c1n = c1 / jnp.maximum(jnp.linalg.norm(c1, axis=-1, keepdims=True), EPS)
    c2n = c2 / jnp.maximum(jnp.linalg.norm(c2, axis=-1, keepdims=True), EPS)
    logits = logit_scale * (c1n @ c2n.T)
    labels = jnp.arange(logits.shape[0])

    def ce(lg):
        lse = jax.scipy.special.logsumexp(lg, axis=1)
        return jnp.mean(lse - lg[jnp.arange(lg.shape[0]), labels])

    return 0.5 * (ce(logits) + ce(logits.T))


if __name__ == "__main__":
    key = jax.random.PRNGKey(0)
    k1, k2 = jax.random.split(key)

    # Small shapes consistent with the module: batch=8, feature dim=32.
    N, D = 8, 32
    cat1 = jax.random.normal(k1, (N, D), dtype=jnp.float32)
    cat2 = jax.random.normal(k2, (N, D), dtype=jnp.float32)

    loss = jax.block_until_ready(clip_loss(cat1, cat2, 1.0))
    ref = jax.block_until_ready(clip_loss_ref(cat1, cat2, 1.0))
    assert jnp.allclose(loss, ref, atol=1e-5, rtol=1e-5), (loss, ref)

    # Multi-tile 4x4 grid, non-128-multiple feature dim (padded), scale=10.
    N2, D2 = 32, 40
    k3, k4 = jax.random.split(k2)
    cat1b = jax.random.normal(k3, (N2, D2), dtype=jnp.float32)
    cat2b = jax.random.normal(k4, (N2, D2), dtype=jnp.float32)
    loss2 = jax.block_until_ready(clip_loss(cat1b, cat2b, 10.0, tq=8, tk=8))
    ref2 = jax.block_until_ready(clip_loss_ref(cat1b, cat2b, 10.0))
    assert jnp.allclose(loss2, ref2, atol=1e-5, rtol=1e-4), (loss2, ref2)

    # Optional bf16-MXU-operand path (v5e throughput option): loose sanity check.
    loss3 = jax.block_until_ready(
        clip_loss(cat1b, cat2b, 10.0, matmul_dtype=jnp.bfloat16))
    assert jnp.allclose(loss3, ref2, atol=0.1, rtol=0.1), (loss3, ref2)

    print("KERNEL_OK")
</pallas_src>

<mosaic_0001>
module attributes {stable_mosaic.version = 11 : i64} {
  func.func @_prenorm_kernel(%arg0: i32, %arg1: memref<1x1xf32, #tpu.memory_space<smem>>, %arg2: memref<8x128xf32, #tpu.memory_space<vmem>>, %arg3: memref<8x128xf32, #tpu.memory_space<vmem>>, %arg4: memref<8x128xf32, #tpu.memory_space<vmem>>, %arg5: memref<8x128xf32, #tpu.memory_space<vmem>>, %arg6: memref<8x1xf32, #tpu.memory_space<vmem>>) attributes {dimension_semantics = [#tpu.dimension_semantics<parallel>], iteration_bounds = array<i64: 1>, scalar_prefetch = 0 : i64, scratch_operands = 0 : i64, tpu.core_type = #tpu.core_type<tc>, window_params = [{transform_indices = @transform_0, window_bounds = array<i64: 1, 1>}, {transform_indices = @transform_1, window_bounds = array<i64: 8, 128>}, {transform_indices = @transform_2, window_bounds = array<i64: 8, 128>}, {transform_indices = @transform_3, window_bounds = array<i64: 8, 128>}, {transform_indices = @transform_4, window_bounds = array<i64: 8, 128>}, {transform_indices = @transform_5, window_bounds = array<i64: 8, 1>}]} {
    %c0 = arith.constant 0 : index
    %c0_0 = arith.constant 0 : index
    %0 = memref.load %arg1[%c0, %c0_0] : memref<1x1xf32, #tpu.memory_space<smem>>
    %c0_1 = arith.constant 0 : index
    %c0_2 = arith.constant 0 : index
    %1 = vector.load %arg2[%c0_1, %c0_2] : memref<8x128xf32, #tpu.memory_space<vmem>>, vector<8x128xf32>
    %c0_3 = arith.constant 0 : index
    %c0_4 = arith.constant 0 : index
    %2 = vector.load %arg3[%c0_3, %c0_4] : memref<8x128xf32, #tpu.memory_space<vmem>>, vector<8x128xf32>
    %3 = arith.mulf %1, %1 : vector<8x128xf32>
    %cst = arith.constant dense<0.000000e+00> : vector<8xf32>
    %4 = vector.multi_reduction <add>, %3, %cst [1] : vector<8x128xf32> to vector<8xf32>
    %5 = vector.shape_cast %4 : vector<8xf32> to vector<8x1xf32>
    %cst_5 = arith.constant 9.99999997E-7 : f32
    %6 = vector.broadcast %cst_5 : f32 to vector<8x1xf32>
    %7 = arith.maximumf %5, %6 : vector<8x1xf32>
    %8 = math.rsqrt %7 : vector<8x1xf32>
    %9 = vector.broadcast %8 : vector<8x1xf32> to vector<8x128xf32>
    %10 = arith.mulf %1, %9 : vector<8x128xf32>
    %11 = arith.mulf %2, %2 : vector<8x128xf32>
    %cst_6 = arith.constant dense<0.000000e+00> : vector<8xf32>
    %12 = vector.multi_reduction <add>, %11, %cst_6 [1] : vector<8x128xf32> to vector<8xf32>
    %13 = vector.shape_cast %12 : vector<8xf32> to vector<8x1xf32>
    %cst_7 = arith.constant 9.99999997E-7 : f32
    %14 = vector.broadcast %cst_7 : f32 to vector<8x1xf32>
    %15 = arith.maximumf %13, %14 : vector<8x1xf32>
    %16 = math.rsqrt %15 : vector<8x1xf32>
    %17 = vector.broadcast %16 : vector<8x1xf32> to vector<8x128xf32>
    %18 = arith.mulf %2, %17 : vector<8x128xf32>
    %19 = vector.broadcast %0 : f32 to vector<8x128xf32>
    %20 = arith.mulf %10, %19 : vector<8x128xf32>
    %21 = arith.mulf %20, %18 : vector<8x128xf32>
    %cst_8 = arith.constant dense<0.000000e+00> : vector<8xf32>
    %22 = vector.multi_reduction <add>, %21, %cst_8 [1] : vector<8x128xf32> to vector<8xf32>
    %23 = vector.shape_cast %22 : vector<8xf32> to vector<8x1xf32>
    %c0_9 = arith.constant 0 : index
    %c0_10 = arith.constant 0 : index
    %24 = vector.load %arg6[%c0_9, %c0_10] : memref<8x1xf32, #tpu.memory_space<vmem>>, vector<8x1xf32>
    tpu.vector_store %arg6[%c0_9, %c0_10], %23 {strides = array<i32>} : memref<8x1xf32, #tpu.memory_space<vmem>>, vector<8x1xf32>,
    %c0_11 = arith.constant 0 : index
    %c0_12 = arith.constant 0 : index
    %25 = vector.load %arg4[%c0_11, %c0_12] : memref<8x128xf32, #tpu.memory_space<vmem>>, vector<8x128xf32>
    tpu.vector_store %arg4[%c0_11, %c0_12], %20 {strides = array<i32>} : memref<8x128xf32, #tpu.memory_space<vmem>>, vector<8x128xf32>,
    %c0_13 = arith.constant 0 : index
    %c0_14 = arith.constant 0 : index
    %26 = vector.load %arg5[%c0_13, %c0_14] : memref<8x128xf32, #tpu.memory_space<vmem>>, vector<8x128xf32>
    tpu.vector_store %arg5[%c0_13, %c0_14], %18 {strides = array<i32>} : memref<8x128xf32, #tpu.memory_space<vmem>>, vector<8x128xf32>,
    return
  }
  func.func @transform_0(%arg0: i32) -> (i32, i32) {
    %c0_i32 = arith.constant 0 : i32
    %c0_i32_0 = arith.constant 0 : i32
    %c0_i32_1 = arith.constant 0 : i32
    return %c0_i32, %c0_i32_0 : i32, i32
  }
  func.func @transform_1(%arg0: i32) -> (i32, i32) {
    %c0_i32 = arith.constant 0 : i32
    %c0_i32_0 = arith.constant 0 : i32
    return %arg0, %c0_i32 : i32, i32
  }
  func.func @transform_2(%arg0: i32) -> (i32, i32) {
    %c0_i32 = arith.constant 0 : i32
    %c0_i32_0 = arith.constant 0 : i32
    return %arg0, %c0_i32 : i32, i32
  }
  func.func @transform_3(%arg0: i32) -> (i32, i32) {
    %c0_i32 = arith.constant 0 : i32
    %c0_i32_0 = arith.constant 0 : i32
    return %arg0, %c0_i32 : i32, i32
  }
  func.func @transform_4(%arg0: i32) -> (i32, i32) {
    %c0_i32 = arith.constant 0 : i32
    %c0_i32_0 = arith.constant 0 : i32
    return %arg0, %c0_i32 : i32, i32
  }
  func.func @transform_5(%arg0: i32) -> (i32, i32) {
    %c0_i32 = arith.constant 0 : i32
    %c0_i32_0 = arith.constant 0 : i32
    return %arg0, %c0_i32 : i32, i32
  }
}

</mosaic_0001>

<llo_original>
// kernel: tpu_custom_call.1
$region0: #{tpu_custom_call.1}
  #allocation0 [shape = 'u32[]', space=smem, size = 0x4, offset = 0x4, fixed_abs, tag = 'smem constant byte address 0x4 - core index']
  #allocation1 [shape = 'u32[72,128]{1,0:T(1,128)}', space=vmem, size = 0x9000, scoped, tag = 'internal scratch']
  #allocation2 [shape = 'f32[1,1]{1,0:T(1,128)S(6)}', space=smem, size = 0x200, scoped, tag = 'scoped memory for tpu_custom_call.1']
  %s0 = inlined_call_operand.<no memory space> [shape: f32[1,1], index: 0, kind: input, shape index: {}]
  %s1 = inlined_call_operand.hbm [shape: f32[8,128], index: 1, kind: input, shape index: {}]
  %s2 = inlined_call_operand.hbm [shape: f32[8,128], index: 2, kind: input, shape index: {}]
  %s3 = inlined_call_operand.hbm [shape: f32[8,128], index: 3, kind: output, shape index: {0}]
  %s4 = inlined_call_operand.hbm [shape: f32[8,128], index: 4, kind: output, shape index: {1}]
  %s5 = inlined_call_operand.vmem [shape: f32[8,1], index: 5, kind: output, shape index: {2}]
  %6 = xla_tuple %s3, %s4, %s5
  %s7 = sld [smem:[#allocation0]]
  $region46: #{tpu_custom_call.1} parent=0
    _
  %s9 = ssub.s32 1, %s7
  %s10 = scalar_select 0, %s9, %s7
  %11 = sst [smem:[#allocation2]] %s0
  $region1: #{tpu_custom_call.1} parent=0
    #allocation3 [shape = 'u8[4096]{0}', space=vmem, size = 0x1000, scoped, tag = 'input window, operand 1, single buffered']
    #allocation4 [shape = 's32[1]{0}', space=sflag, size = 0x4, scoped, tag = 'scoped memory for tpu_custom_call.1']
    #allocation5 [shape = 's32[1]{0}', space=sflag, size = 0x4, scoped, tag = 'scoped memory for tpu_custom_call.1']
    #allocation6 [shape = 'u8[4096]{0}', space=vmem, size = 0x1000, scoped, tag = 'input window, operand 2, single buffered']
    #allocation7 [shape = 's32[1]{0}', space=sflag, size = 0x4, scoped, tag = 'scoped memory for tpu_custom_call.1']
    #allocation8 [shape = 'u8[4096]{0}', space=vmem, size = 0x1000, scoped, tag = 'output window, operand 0, single buffered']
    #allocation9 [shape = 'u8[4096]{0}', space=vmem, size = 0x1000, scoped, tag = 'output window, operand 1, single buffered']
    #allocation10 [shape = 's32[1]{0}', space=sflag, size = 0x4, scoped, tag = 'scoped memory for tpu_custom_call.1']
    %12 = vsyncpa [#allocation4], 0
    %13 = vsyncpa [#allocation7], 0
    %14 = vsyncpa [#allocation5], 0
    %15 = vsyncpa [#allocation10], 0
    // Predicated region
    $region2: #{tpu_custom_call.1} parent=1 // pred_check
      _
    $region3: #{tpu_custom_call.1} parent=1 // pred_check_branch
      %17 = sbr.rel (0) target = $region5
    $region4: #{tpu_custom_call.1} parent=1 // pred_region
      _
    $region5: #{tpu_custom_call.1} parent=1 // pred_fallthru
      _
    // Predicated region
    $region6: #{tpu_custom_call.1} parent=1 // pred_check
      _
    $region7: #{tpu_custom_call.1} parent=1 // pred_check_branch
      %19 = sbr.rel (0) target = $region9
    $region8: #{tpu_custom_call.1} parent=1 // pred_region
      %21 = vsyncadd [#allocation4], 0
      %s23 = sshll.u32 %s1, 4
      %s24 = int_to_ptr.hbm [resolvable:$true] %s23
      %s25 = sshll.u32 [#allocation3], 4
      %s26 = int_to_ptr.vmem [resolvable:$true] %s25
      %28 = dma.hbm_to_vmem [thread:$0]  %s24, 128, %s26, [#allocation4]
    $region9: #{tpu_custom_call.1} parent=1 // pred_fallthru
      _
    // Predicated region
    $region10: #{tpu_custom_call.1} parent=1 // pred_check
      _
    $region11: #{tpu_custom_call.1} parent=1 // pred_check_branch
      %30 = sbr.rel (0) target = $region13
    $region12: #{tpu_custom_call.1} parent=1 // pred_region
      %32 = vsyncadd [#allocation7], 0
      %s34 = sshll.u32 %s2, 4
      %s35 = int_to_ptr.hbm [resolvable:$true] %s34
      %s36 = sshll.u32 [#allocation6], 4
      %s37 = int_to_ptr.vmem [resolvable:$true] %s36
      %39 = dma.hbm_to_vmem [thread:$0]  %s35, 128, %s37, [#allocation7]
    $region13: #{tpu_custom_call.1} parent=1 // pred_fallthru
      _
    // Predicated region
    $region14: #{tpu_custom_call.1} parent=1 // pred_check
      _
    $region15: #{tpu_custom_call.1} parent=1 // pred_check_branch
      %41 = sbr.rel (0) target = $region17
    $region16: #{tpu_custom_call.1} parent=1 // pred_region
      %43 = dma.done [#allocation4], 128
    $region17: #{tpu_custom_call.1} parent=1 // pred_fallthru
      _
    // Predicated region
    $region18: #{tpu_custom_call.1} parent=1 // pred_check
      _
    $region19: #{tpu_custom_call.1} parent=1 // pred_check_branch
      %45 = sbr.rel (0) target = $region21
    $region20: #{tpu_custom_call.1} parent=1 // pred_region
      %47 = dma.done [#allocation7], 128
    $region21: #{tpu_custom_call.1} parent=1 // pred_fallthru
      _
    %s48 = sld [smem:[#allocation2]]
    %v49 = vld [vmem:[#allocation3] sm:$0xff]
    %v50 = vld [vmem:[#allocation6] sm:$0xff]
    %v51 = vmul.f32 %v49, %v49
    %52 = vadd.xlane.f32.xlu0 %v51
    %v53 = vpop.xlane.xlu0 %52
    %v54 = vmax.f32 %v53, 1e-06
    %v55 = vrsqrt.pop %v54
    %v56 = vmul.f32 %v55, %v54
    %v57 = vmul.f32 %v56, %v55
    %v58 = vmul.f32 0.5, %v57
    %v59 = vsub.f32 1.5, %v58
    %v60 = vmul.f32 %v55, %v59
    %vm61 = vweird.f32 %v54
    %vm62 = vweird.f32 %v55
    %vm63 = vmor %vm61, %vm62
    %v64 = vsel %vm63, %v55, %v60
    %v65 = vmul.f32 %v49, %v64
    %v66 = vmul.f32 %v50, %v50
    %67 = vadd.xlane.f32.xlu0 %v66
    %v68 = vpop.xlane.xlu0 %67
    %v69 = vmax.f32 %v68, 1e-06
    %v70 = vrsqrt.pop %v69
    %v71 = vmul.f32 %v70, %v69
    %v72 = vmul.f32 %v71, %v70
    %v73 = vmul.f32 0.5, %v72
    %v74 = vsub.f32 1.5, %v73
    %v75 = vmul.f32 %v70, %v74
    %vm76 = vweird.f32 %v69
    %vm77 = vweird.f32 %v70
    %vm78 = vmor %vm76, %vm77
    %v79 = vsel %vm78, %v70, %v75
    %v80 = vmul.f32 %v50, %v79
    %v81 = vstv %s48
    %v82 = vmul.f32 %v65, %v81
    %v83 = vmul.f32 %v82, %v80
    %84 = vadd.xlane.f32.xlu0 %v83
    %v85 = vpop.xlane.xlu0 %84
    %vm86 = vcmask 7168
    %87 = vst.msk [vmem:[%s5] sm:$0xff] %vm86, %v85
    %88 = vst [vmem:[#allocation8] sm:$0xff] %v82
    %89 = vst [vmem:[#allocation9] sm:$0xff] %v80
    // Predicated region
    $region22: #{tpu_custom_call.1} parent=1 // pred_check
      _
    $region23: #{tpu_custom_call.1} parent=1 // pred_check_branch
      %91 = sbr.rel (0) target = $region25
    $region24: #{tpu_custom_call.1} parent=1 // pred_region
      %93 = vsyncadd [#allocation5], 0
      %s95 = sshll.u32 [#allocation8], 4
      %s96 = int_to_ptr.vmem [resolvable:$true] %s95
      %s97 = sshll.u32 %s3, 4
      %s98 = int_to_ptr.hbm [resolvable:$true] %s97
      %100 = dma.vmem_to_hbm [thread:$0]  %s96, 128, %s98, [#allocation5]
    $region25: #{tpu_custom_call.1} parent=1 // pred_fallthru
      _
    // Predicated region
    $region26: #{tpu_custom_call.1} parent=1 // pred_check
      _
    $region27: #{tpu_custom_call.1} parent=1 // pred_check_branch
      %102 = sbr.rel (0) target = $region29
    $region28: #{tpu_custom_call.1} parent=1 // pred_region
      %104 = vsyncadd [#allocation10], 0
      %s106 = sshll.u32 [#allocation9], 4
      %s107 = int_to_ptr.vmem [resolvable:$true] %s106
      %s108 = sshll.u32 %s4, 4
      %s109 = int_to_ptr.hbm [resolvable:$true] %s108
      %111 = dma.vmem_to_hbm [thread:$0]  %s107, 128, %s109, [#allocation10]
    $region29: #{tpu_custom_call.1} parent=1 // pred_fallthru
      _
    // Predicated region
    $region30: #{tpu_custom_call.1} parent=1 // pred_check
      _
    $region31: #{tpu_custom_call.1} parent=1 // pred_check_branch
      %113 = sbr.rel (0) target = $region33
    $region32: #{tpu_custom_call.1} parent=1 // pred_region
      _
    $region33: #{tpu_custom_call.1} parent=1 // pred_fallthru
      _
    // Predicated region
    $region34: #{tpu_custom_call.1} parent=1 // pred_check
      _
    $region35: #{tpu_custom_call.1} parent=1 // pred_check_branch
      %115 = sbr.rel (0) target = $region37
    $region36: #{tpu_custom_call.1} parent=1 // pred_region
      %117 = dma.done [#allocation5], 128
    $region37: #{tpu_custom_call.1} parent=1 // pred_fallthru
      _
    // Predicated region
    $region38: #{tpu_custom_call.1} parent=1 // pred_check
      _
    $region39: #{tpu_custom_call.1} parent=1 // pred_check_branch
      %119 = sbr.rel (0) target = $region41
    $region40: #{tpu_custom_call.1} parent=1 // pred_region
      %121 = dma.done [#allocation10], 128
    $region41: #{tpu_custom_call.1} parent=1 // pred_fallthru
      _
    // Predicated region
    $region42: #{tpu_custom_call.1} parent=1 // pred_check
      _
    $region43: #{tpu_custom_call.1} parent=1 // pred_check_branch
      %123 = sbr.rel (0) target = $region45
    $region44: #{tpu_custom_call.1} parent=1 // pred_region
      _
    $region45: #{tpu_custom_call.1} parent=1 // pred_fallthru
      _
    %124 = vsyncpa [#allocation4], 1
    %125 = vsyncpa [#allocation7], 1
    %126 = vsyncpa [#allocation5], 1
    %127 = vsyncpa [#allocation10], 1

</llo_original>
